<compile_context>
chip_gen: v7x
topology: tpu7x:2x2x1
jax: 0.10.0
libtpu: 0.0.40
codegen_flags: <defaults>
</compile_context>

<pallas_src>
import math
import functools

import jax
import jax.numpy as jnp
from jax import lax
from jax.experimental import pallas as pl
from jax.experimental.pallas import tpu as pltpu

_MiB = 1024 * 1024


def _cdiv(a, b):
    return -(-a // b)


def _round_up(x, m):
    return _cdiv(x, m) * m


def _aam_constants(margin):
    return (math.cos(margin),
            math.sin(margin),
            math.cos(math.pi - margin),
            math.sin(math.pi - margin) * margin)


@functools.lru_cache(maxsize=1)
def _tpu_budget():
    """Returns (block_budget_bytes, vmem_capacity_bytes_or_None, n_tensorcores)."""
    cap = None
    try:
        cap = int(pltpu.get_tpu_info().vmem_capacity_bytes)
    except Exception:
        cap = None
    if cap is None:
        # Unknown part: conservative budget that fits every scoped default.
        return 12 * _MiB, None, 1
    if cap <= 72 * _MiB:
        # v7x-class: 64 MiB physical VMEM per TC, 2 TensorCores per chip.
        # Cap the double-buffered working set well below the scoped limit.
        return 20 * _MiB, cap, 2
    # v5e/v6e-class: 128 MiB physical VMEM, single TensorCore -> bigger tiles.
    return 24 * _MiB, cap, 1


def _choose_tiles(N, C, stream_itemsizes):
    """Pick (block_n, block_c, vmem_limit_bytes) for the 2-D elementwise grid."""
    budget, cap, n_cores = _tpu_budget()

    # Lane-dense C tile: full C unless it is huge and 128-aligned.
    if C % 128 == 0 and C > 2048:
        block_c = 2048
    else:
        block_c = C

    # Sublane granularity: 8 rows for 4-byte streams, 16 if any 2-byte stream.
    sublane = 16 if min(stream_itemsizes) < 4 else 8

    bytes_per_row = 2 * block_c * sum(stream_itemsizes)   # x2: double-buffered
    budget_rows = max(sublane, budget // max(bytes_per_row, 1))

    if budget_rows >= N and n_cores < 2:
        # Single TC and everything fits: one full-dim row block (no split --
        # an extra grid step would only add per-step overhead).
        block_n = N
    else:
        n_blocks = _cdiv(N, min(budget_rows, N))
        if n_cores >= 2 and n_blocks % 2 == 1 and N >= 2 * sublane:
            # Keep an even number of row blocks so both TensorCores stay busy.
            n_blocks += 1
        block_n = _round_up(_cdiv(N, n_blocks), sublane)
        if block_n >= N:
            block_n = N

    block_bytes = 2 * block_n * block_c * sum(stream_itemsizes)
    hard_cap = 28 * _MiB if (cap is None or cap <= 72 * _MiB) else 64 * _MiB
    vmem_limit = min(block_bytes + 8 * _MiB, hard_cap)
    vmem_limit = int(max(vmem_limit, block_bytes + 4 * _MiB, 16 * _MiB))
    return block_n, block_c, vmem_limit


def _aam_phi(cosine, cos_m, sin_m, th, mm, easy_margin):
    # NOTE: sqrt of a negative (|cosine| > 1 from upstream error) gives NaN,
    # matching the torch.sqrt semantics of the reference module.
    sine = jnp.sqrt(1.0 - cosine * cosine)
    phi = cosine * cos_m - sine * sin_m
    if easy_margin:
        return jnp.where(cosine > 0.0, phi, cosine)
    return jnp.where(cosine > th, phi, cosine - mm)


def _aam_dense_kernel(cos_ref, tgt_ref, pred_ref, *,
                      cos_m, sin_m, th, mm, scale, easy_margin):
    # Padded rows/lanes of a partial edge block may compute garbage (even NaN);
    # Pallas masks the writeback and there are no reductions over the tile, so
    # this is harmless -- do not add tile-wide reductions here.
    cosine = cos_ref[...].astype(jnp.float32)
    targets = tgt_ref[...].astype(jnp.float32)
    phi = _aam_phi(cosine, cos_m, sin_m, th, mm, easy_margin)
    # targets*phi + (1-targets)*cosine == cosine + targets*(phi - cosine)
    pred_ref[...] = (scale * (cosine + targets * (phi - cosine))
                     ).astype(pred_ref.dtype)


def _aam_label_kernel(cos_ref, lbl_ref, pred_ref, *,
                      block_c, cos_m, sin_m, th, mm, scale, easy_margin):
    cosine = cos_ref[...].astype(jnp.float32)
    phi = _aam_phi(cosine, cos_m, sin_m, th, mm, easy_margin)
    bn, bc = cosine.shape
    # Rebuild the one-hot mask in-kernel: shift the per-row label into this
    # block's local column frame (one scalar op on a (bn,1) vector) and compare
    # against a plain iota -- avoids a full-tile VALU add.
    local_lbl = lbl_ref[...] - pl.program_id(1) * block_c          # (bn, 1)
    col = lax.broadcasted_iota(jnp.int32, (bn, bc), 1)
    mask = (col == local_lbl).astype(jnp.float32)
    pred_ref[...] = (scale * (cosine + mask * (phi - cosine))
                     ).astype(pred_ref.dtype)


def additive_angular_margin(outputs, targets, *, margin=0.0, scale=1.0,
                            easy_margin=False, out_dtype=None):
    """Pallas implementation of AdditiveAngularMargin.forward.

    outputs, targets: [N, C] arrays (targets may be soft; exact module
    semantics).  out_dtype=None -> float32 (matches the torch module, which
    upcasts via .float()); pass e.g. jnp.bfloat16 to halve the write stream.
    """
    assert outputs.shape == targets.shape and outputs.ndim == 2
    out_dtype = jnp.dtype(jnp.float32 if out_dtype is None else out_dtype)
    N, C = outputs.shape
    orig_shape = (N, C)

    # Lane-dense flattening for small class counts: elementwise op, so the
    # reshape is free and it turns masked partial stores into full 128-lane
    # stores (biggest single lever for small-C shapes).
    if C < 128 and (N * C) % 128 == 0 and (N * C) >= 128:
        outputs = outputs.reshape(-1, 128)
        targets = targets.reshape(-1, 128)
        N, C = outputs.shape

    cos_m, sin_m, th, mm = _aam_constants(margin)
    itemsizes = (outputs.dtype.itemsize, targets.dtype.itemsize,
                 out_dtype.itemsize)
    block_n, block_c, vmem_limit = _choose_tiles(N, C, itemsizes)
    grid = (_cdiv(N, block_n), _cdiv(C, block_c))

    kernel = functools.partial(
        _aam_dense_kernel, cos_m=cos_m, sin_m=sin_m, th=th, mm=mm,
        scale=scale, easy_margin=easy_margin)

    out = pl.pallas_call(
        kernel,
        out_shape=jax.ShapeDtypeStruct((N, C), out_dtype),
        grid_spec=pl.GridSpec(
            grid=grid,
            in_specs=[
                pl.BlockSpec((block_n, block_c), lambda i, j: (i, j)),
                pl.BlockSpec((block_n, block_c), lambda i, j: (i, j)),
            ],
            out_specs=pl.BlockSpec((block_n, block_c), lambda i, j: (i, j)),
        ),
        compiler_params=pltpu.CompilerParams(
            dimension_semantics=("parallel", "parallel"),
            vmem_limit_bytes=vmem_limit),
    )(outputs, targets)
    return out.reshape(orig_shape)


def additive_angular_margin_from_labels(outputs, labels, *, margin=0.0,
                                        scale=1.0, easy_margin=False,
                                        out_dtype=None):
    """Fast path for one-hot targets: pass integer labels [N] instead of a
    dense [N, C] one-hot matrix.  Cuts HBM traffic to 1 read + 1 write."""
    assert outputs.ndim == 2 and labels.shape == (outputs.shape[0],)
    out_dtype = jnp.dtype(jnp.float32 if out_dtype is None else out_dtype)
    N, C = outputs.shape
    labels2d = labels.astype(jnp.int32).reshape(N, 1)

    cos_m, sin_m, th, mm = _aam_constants(margin)
    itemsizes = (outputs.dtype.itemsize, out_dtype.itemsize)  # label stream ~0
    block_n, block_c, vmem_limit = _choose_tiles(N, C, itemsizes)
    grid = (_cdiv(N, block_n), _cdiv(C, block_c))

    kernel = functools.partial(
        _aam_label_kernel, block_c=block_c, cos_m=cos_m, sin_m=sin_m, th=th,
        mm=mm, scale=scale, easy_margin=easy_margin)

    return pl.pallas_call(
        kernel,
        out_shape=jax.ShapeDtypeStruct((N, C), out_dtype),
        grid_spec=pl.GridSpec(
            grid=grid,
            in_specs=[
                pl.BlockSpec((block_n, block_c), lambda i, j: (i, j)),
                pl.BlockSpec((block_n, 1), lambda i, j: (i, 0)),
            ],
            out_specs=pl.BlockSpec((block_n, block_c), lambda i, j: (i, j)),
        ),
        compiler_params=pltpu.CompilerParams(
            dimension_semantics=("parallel", "parallel"),
            vmem_limit_bytes=vmem_limit),
    )(outputs, labels2d)


def _reference(outputs, targets, margin, scale, easy_margin):
    cos_m, sin_m, th, mm = _aam_constants(margin)
    cosine = outputs.astype(jnp.float32)
    sine = jnp.sqrt(1.0 - cosine ** 2)
    phi = cosine * cos_m - sine * sin_m
    if easy_margin:
        phi = jnp.where(cosine > 0, phi, cosine)
    else:
        phi = jnp.where(cosine > th, phi, cosine - mm)
    out = targets.astype(jnp.float32) * phi + (1.0 - targets.astype(jnp.float32)) * cosine
    return scale * out


if __name__ == "__main__":
    key = jax.random.PRNGKey(0)
    margin, scale = 0.2, 30.0
    ok = True

    def close(pred, ref, atol, rtol):
        return bool(jnp.allclose(pred.astype(jnp.float32),
                                 ref.astype(jnp.float32), atol=atol, rtol=rtol))

    cases = [
        ((8, 128), jnp.float32),     # lane-aligned C, multi-stream dense path
        ((16, 40), jnp.float32),     # C < 128 -> flattened lane-dense path
        ((64, 256), jnp.bfloat16),   # bf16 I/O fast path (out_dtype=bf16)
    ]
    for (N, C), dt in cases:
        k1, k2, key = jax.random.split(key, 3)
        outputs = jnp.tanh(jax.random.normal(k1, (N, C), dtype=jnp.float32)).astype(dt)
        labels = jax.random.randint(k2, (N,), 0, C)
        targets = jax.nn.one_hot(labels, C, dtype=dt)

        out_dtype = jnp.bfloat16 if dt == jnp.bfloat16 else None
        atol, rtol = (0.3, 2e-2) if dt == jnp.bfloat16 else (1e-5, 1e-5)

        for easy in (False, True):
            ref = _reference(outputs, targets, margin, scale, easy)
            if out_dtype is not None:
                ref = ref.astype(out_dtype)

            preds = additive_angular_margin(
                outputs, targets, margin=margin, scale=scale,
                easy_margin=easy, out_dtype=out_dtype)
            preds = jax.block_until_ready(preds)
            want_dtype = jnp.dtype(jnp.float32 if out_dtype is None else out_dtype)
            ok &= (preds.shape == (N, C) and preds.dtype == want_dtype)
            ok &= close(preds, ref, atol, rtol)

            preds_lbl = additive_angular_margin_from_labels(
                outputs, labels, margin=margin, scale=scale,
                easy_margin=easy, out_dtype=out_dtype)
            preds_lbl = jax.block_until_ready(preds_lbl)
            ok &= (preds_lbl.shape == (N, C) and preds_lbl.dtype == want_dtype)
            ok &= close(preds_lbl, ref, atol, rtol)

    assert ok
    print("KERNEL_OK")
</pallas_src>

<mosaic_0001>
module attributes {stable_mosaic.version = 11 : i64} {
  func.func @_aam_dense_kernel(%arg0: i32, %arg1: i32, %arg2: memref<8x128xf32, #tpu.memory_space<vmem>>, %arg3: memref<8x128xf32, #tpu.memory_space<vmem>>, %arg4: memref<8x128xf32, #tpu.memory_space<vmem>>) attributes {dimension_semantics = [#tpu.dimension_semantics<parallel>, #tpu.dimension_semantics<parallel>], iteration_bounds = array<i64: 1, 1>, scalar_prefetch = 0 : i64, scratch_operands = 0 : i64, tpu.core_type = #tpu.core_type<tc>, window_params = [{transform_indices = @transform_0, window_bounds = array<i64: 8, 128>}, {transform_indices = @transform_1, window_bounds = array<i64: 8, 128>}, {transform_indices = @transform_2, window_bounds = array<i64: 8, 128>}]} {
    %c0 = arith.constant 0 : index
    %c0_0 = arith.constant 0 : index
    %0 = vector.load %arg2[%c0, %c0_0] : memref<8x128xf32, #tpu.memory_space<vmem>>, vector<8x128xf32>
    %c0_1 = arith.constant 0 : index
    %c0_2 = arith.constant 0 : index
    %1 = vector.load %arg3[%c0_1, %c0_2] : memref<8x128xf32, #tpu.memory_space<vmem>>, vector<8x128xf32>
    %2 = arith.mulf %0, %0 : vector<8x128xf32>
    %cst = arith.constant 1.000000e+00 : f32
    %3 = vector.broadcast %cst : f32 to vector<8x128xf32>
    %4 = arith.subf %3, %2 : vector<8x128xf32>
    %5 = math.sqrt %4 : vector<8x128xf32>
    %cst_3 = arith.constant 0.980066597 : f32
    %6 = vector.broadcast %cst_3 : f32 to vector<8x128xf32>
    %7 = arith.mulf %0, %6 : vector<8x128xf32>
    %cst_4 = arith.constant 0.198669329 : f32
    %8 = vector.broadcast %cst_4 : f32 to vector<8x128xf32>
    %9 = arith.mulf %5, %8 : vector<8x128xf32>
    %10 = arith.subf %7, %9 : vector<8x128xf32>
    %cst_5 = arith.constant -0.980066597 : f32
    %11 = vector.broadcast %cst_5 : f32 to vector<8x128xf32>
    %12 = arith.cmpf ogt, %0, %11 : vector<8x128xf32>
    %cst_6 = arith.constant 0.0397338644 : f32
    %13 = vector.broadcast %cst_6 : f32 to vector<8x128xf32>
    %14 = arith.subf %0, %13 : vector<8x128xf32>
    %15 = arith.select %12, %10, %14 : vector<8x128xi1>, vector<8x128xf32>
    %16 = arith.subf %15, %0 : vector<8x128xf32>
    %17 = arith.mulf %1, %16 : vector<8x128xf32>
    %18 = arith.addf %0, %17 : vector<8x128xf32>
    %cst_7 = arith.constant 3.000000e+01 : f32
    %19 = vector.broadcast %cst_7 : f32 to vector<8x128xf32>
    %20 = arith.mulf %19, %18 : vector<8x128xf32>
    %c0_8 = arith.constant 0 : index
    %c0_9 = arith.constant 0 : index
    %21 = vector.load %arg4[%c0_8, %c0_9] : memref<8x128xf32, #tpu.memory_space<vmem>>, vector<8x128xf32>
    tpu.vector_store %arg4[%c0_8, %c0_9], %20 {strides = array<i32>} : memref<8x128xf32, #tpu.memory_space<vmem>>, vector<8x128xf32>,
    return
  }
  func.func @transform_0(%arg0: i32, %arg1: i32) -> (i32, i32) {
    %c0_i32 = arith.constant 0 : i32
    return %arg0, %arg1 : i32, i32
  }
  func.func @transform_1(%arg0: i32, %arg1: i32) -> (i32, i32) {
    %c0_i32 = arith.constant 0 : i32
    return %arg0, %arg1 : i32, i32
  }
  func.func @transform_2(%arg0: i32, %arg1: i32) -> (i32, i32) {
    %c0_i32 = arith.constant 0 : i32
    return %arg0, %arg1 : i32, i32
  }
}

</mosaic_0001>

<llo_original>
// kernel: tpu_custom_call.1
$region0: #{tpu_custom_call.1}
  #allocation0 [shape = 'u32[]', space=smem, size = 0x4, offset = 0x4, fixed_abs, tag = 'smem constant byte address 0x4 - core index']
  #allocation1 [shape = 'u32[144,128]{1,0:T(1,128)}', space=vmem, size = 0x12000, scoped, tag = 'internal scratch']
  %s0 = inlined_call_operand.hbm [shape: f32[8,128], index: 0, kind: input, shape index: {}]
  %s1 = inlined_call_operand.hbm [shape: f32[8,128], index: 1, kind: input, shape index: {}]
  %s2 = inlined_call_operand.hbm [shape: f32[8,128], index: 2, kind: output, shape index: {}]
  %s3 = sld [smem:[#allocation0]]
  $region26: #{tpu_custom_call.1} parent=0
    _
  %s5 = ssub.s32 1, %s3
  %s6 = scalar_select 0, %s5, %s3
  $region1: #{tpu_custom_call.1} parent=0
    #allocation2 [shape = 'u8[4096]{0}', space=vmem, size = 0x1000, scoped, tag = 'input window, operand 0, single buffered']
    #allocation3 [shape = 's32[1]{0}', space=sflag, size = 0x4, scoped, tag = 'scoped memory for tpu_custom_call.1']
    #allocation4 [shape = 's32[1]{0}', space=sflag, size = 0x4, scoped, tag = 'scoped memory for tpu_custom_call.1']
    #allocation5 [shape = 'u8[4096]{0}', space=vmem, size = 0x1000, scoped, tag = 'input window, operand 1, single buffered']
    #allocation6 [shape = 's32[1]{0}', space=sflag, size = 0x4, scoped, tag = 'scoped memory for tpu_custom_call.1']
    #allocation7 [shape = 'u8[4096]{0}', space=vmem, size = 0x1000, scoped, tag = 'output window, operand 0, single buffered']
    %7 = vsyncpa [#allocation3], 0
    %8 = vsyncpa [#allocation6], 0
    %9 = vsyncpa [#allocation4], 0
    // Predicated region
    $region2: #{tpu_custom_call.1} parent=1 // pred_check
      _
    $region3: #{tpu_custom_call.1} parent=1 // pred_check_branch
      %11 = sbr.rel (0) target = $region5
    $region4: #{tpu_custom_call.1} parent=1 // pred_region
      %s13 = ssub.s32 128, 128
      %14 = vsyncadd [#allocation3], %s13
      %s16 = sshll.u32 [#allocation2], 4
      %s17 = int_to_ptr.vmem [resolvable:$true] %s16
      %19 = dma.hbm_to_vmem [thread:$0]  %s0, 128, %s17, [#allocation3]
    $region5: #{tpu_custom_call.1} parent=1 // pred_fallthru
      _
    // Predicated region
    $region6: #{tpu_custom_call.1} parent=1 // pred_check
      _
    $region7: #{tpu_custom_call.1} parent=1 // pred_check_branch
      %21 = sbr.rel (0) target = $region9
    $region8: #{tpu_custom_call.1} parent=1 // pred_region
      %s23 = ssub.s32 128, 128
      %24 = vsyncadd [#allocation6], %s23
      %s26 = sshll.u32 [#allocation5], 4
      %s27 = int_to_ptr.vmem [resolvable:$true] %s26
      %29 = dma.hbm_to_vmem [thread:$0]  %s1, 128, %s27, [#allocation6]
    $region9: #{tpu_custom_call.1} parent=1 // pred_fallthru
      _
    // Predicated region
    $region10: #{tpu_custom_call.1} parent=1 // pred_check
      _
    $region11: #{tpu_custom_call.1} parent=1 // pred_check_branch
      %31 = sbr.rel (0) target = $region13
    $region12: #{tpu_custom_call.1} parent=1 // pred_region
      %32 = dma.done [#allocation3], 128
    $region13: #{tpu_custom_call.1} parent=1 // pred_fallthru
      _
    // Predicated region
    $region14: #{tpu_custom_call.1} parent=1 // pred_check
      _
    $region15: #{tpu_custom_call.1} parent=1 // pred_check_branch
      %34 = sbr.rel (0) target = $region17
    $region16: #{tpu_custom_call.1} parent=1 // pred_region
      %35 = dma.done [#allocation6], 128
    $region17: #{tpu_custom_call.1} parent=1 // pred_fallthru
      _
    %v36 = vld [vmem:[#allocation2] sm:$0xff]
    %v37 = vld [vmem:[#allocation5] sm:$0xff]
    %v38 = vmul.f32 %v36, %v36
    %v39 = vsub.f32 1.0, %v38
    %v40 = vrsqrt.pop %v39
    %v41 = vmul.f32 %v39, %v40
    %vm42 = vcmp.eq.f32.partialorder %v39, inf
    %v43 = vsel %vm42, %v39, %v41
    %vm44 = vcmp.eq.f32.partialorder %v39, 0.0
    %v45 = vand.u32 %v39, 2147483648
    %v46 = vsel %vm44, %v45, %v43
    %v47 = vmul.f32 %v36, 0.9800666
    %v48 = vmul.f32 %v46, 0.19866933
    %v49 = vsub.f32 %v47, %v48
    %vm50 = vcmp.gt.f32.partialorder %v36, -0.9800666
    %v51 = vsub.f32 %v36, 0.039733864
    %v52 = vsel %vm50, %v49, %v51
    %v53 = vsub.f32 %v52, %v36
    %v54 = vmul.f32 %v37, %v53
    %v55 = vadd.f32 %v36, %v54
    %v56 = vmul.f32 %v55, 30.0
    %57 = vst [vmem:[#allocation7] sm:$0xff] %v56
    // Predicated region
    $region18: #{tpu_custom_call.1} parent=1 // pred_check
      _
    $region19: #{tpu_custom_call.1} parent=1 // pred_check_branch
      %59 = sbr.rel (0) target = $region21
    $region20: #{tpu_custom_call.1} parent=1 // pred_region
      %s61 = ssub.s32 128, 128
      %62 = vsyncadd [#allocation4], %s61
      %s64 = sshll.u32 [#allocation7], 4
      %s65 = int_to_ptr.vmem [resolvable:$true] %s64
      %67 = dma.vmem_to_hbm [thread:$0]  %s65, 128, %s2, [#allocation4]
    $region21: #{tpu_custom_call.1} parent=1 // pred_fallthru
      _
    // Predicated region
    $region22: #{tpu_custom_call.1} parent=1 // pred_check
      _
    $region23: #{tpu_custom_call.1} parent=1 // pred_check_branch
      %69 = sbr.rel (0) target = $region25
    $region24: #{tpu_custom_call.1} parent=1 // pred_region
      %70 = dma.done [#allocation4], 128
    $region25: #{tpu_custom_call.1} parent=1 // pred_fallthru
      _
    %71 = vsyncpa [#allocation3], 1
    %72 = vsyncpa [#allocation6], 1
    %73 = vsyncpa [#allocation4], 1

</llo_original>
